<compile_context>
chip_gen: v7x
topology: tpu7x:2x2x1
jax: 0.10.0
libtpu: 0.0.40
codegen_flags: <defaults>
</compile_context>

<pallas_src>
import functools

import jax
import jax.numpy as jnp
import numpy as np
from jax.experimental import pallas as pl
from jax.experimental.pallas import tpu as pltpu

NEG_SLOPE = 0.01  # PyTorch nn.LeakyReLU default negative_slope


def _leaky(x):
    # Equivalent to LeakyReLU for 0 < slope < 1; mul+max (2 VPU ops per vreg)
    # instead of cmp+mul+select (3).
    return jnp.maximum(x, NEG_SLOPE * x)


def pep_kernel(x_ref, w0_ref, w1_ref, dwt_ref, w2_ref, wd_ref, bias_ref,
               mask_ref, o_ref, *, W):
    """One image per grid step.  Channels on sublanes, flattened H*W on lanes.

    x_ref   : (Cin+1, M)    f32   image + constant-1 channel (feeds bias columns)
    w0_ref  : (mid,  Cin+1) bf16  conv1x1_0 weight | b0      (BN scale folded)
    w1_ref  : (mid2, mid)   bf16  conv1x1_1 weight           (scale folded)
    dwt_ref : (mid2, 9)     f32   depthwise taps, col k=(dy+1)*3+(dx+1) (scale folded)
    w2_ref  : (Cout, mid2)  bf16  conv1x1_2 weight           (scale folded)
    wd_ref  : (Cout, Cin+1) bf16  downsample weight | (bd + b2)
    bias_ref: (mid2, 2)     f32   remaining per-channel shifts [b1 | bdw]
    mask_ref: (8, M)        f32   boundary masks for the 8 off-center taps
    o_ref   : (Cout, M)
    """
    _, M = x_ref.shape
    x_bf = x_ref[...].astype(jnp.bfloat16)          # used by stage 0 and downsample
    bias = bias_ref[...]                            # (mid2, 2) f32

    # ---- stage 0: conv1x1_0 + BN + leaky (bias in the weight's last column) ----
    h0 = _leaky(jnp.dot(w0_ref[...], x_bf, preferred_element_type=jnp.float32))

    # ---- stage 1: conv1x1_1 + BN + leaky ----
    h1 = jnp.dot(w1_ref[...], h0.astype(jnp.bfloat16),
                 preferred_element_type=jnp.float32)            # (mid2, M)
    h1 = _leaky(h1 + bias[:, 0:1])

    # ---- depthwise 3x3 (pad=1) + BN + leaky: XLU rolls + precomputed masks ----
    dwt = dwt_ref[...]                                          # (mid2, 9) f32
    masks = mask_ref[...]                                       # (8, M)   f32
    acc = h1 * dwt[:, 4:5]                                      # center tap
    ki = 0
    for dy in (-1, 0, 1):
        for dx in (-1, 0, 1):
            if dy == 0 and dx == 0:
                continue
            k = (dy + 1) * 3 + (dx + 1)
            off = dy * W + dx
            # tap[:, m] = h1[:, m + off]; wraps are zeroed by the static mask.
            tap = pltpu.roll(h1, (-off) % M, 1)
            acc = acc + (tap * masks[ki:ki + 1, :]) * dwt[:, k:k + 1]
            ki += 1
    dwq = _leaky(acc + bias[:, 1:2])

    # ---- stage 2: conv1x1_2 + BN (b2 folded into the downsample bias column) ----
    h2 = jnp.dot(w2_ref[...], dwq.astype(jnp.bfloat16),
                 preferred_element_type=jnp.float32)            # (Cout, M)

    # ---- downsample (computed late to keep its (Cout, M) result short-lived),
    #      residual add, final leaky; lane-dense (Cout, M) store ----
    ident = jnp.dot(wd_ref[...], x_bf, preferred_element_type=jnp.float32)
    o_ref[...] = _leaky(ident + h2).astype(o_ref.dtype)


def pep_forward(x_nchw, params):
    """x_nchw: (N, Cin, H, W) float32 (PyTorch layout); params from make_params."""
    (w0, s0, b0, w1, s1, b1, dw, sdw, bdw, w2, s2, b2, wd, sd, bd) = params
    N, Cin, H, W = x_nchw.shape
    mid = w0.shape[0]
    mid2 = w1.shape[0]
    Cout = w2.shape[0]
    M = H * W

    # Fold BN scale into conv weights; append bias columns for the two branches
    # fed directly by x (b2 rides with bd: both land on the final pre-activation
    # sum).  MXU-only weights pre-cast to bf16.
    w0a = jnp.concatenate([w0 * s0[:, None], b0[:, None]], axis=1).astype(jnp.bfloat16)
    wda = jnp.concatenate([wd * sd[:, None], (bd + b2)[:, None]], axis=1).astype(jnp.bfloat16)
    w1a = (w1 * s1[:, None]).astype(jnp.bfloat16)
    w2a = (w2 * s2[:, None]).astype(jnp.bfloat16)
    dwf = (dw * sdw[:, None, None]).reshape(mid2, 9)            # f32, feeds VPU math
    bias = jnp.stack([b1, bdw], axis=1)                         # (mid2, 2) f32

    # Per-image layout (N, Cin+1, H*W): contiguous reshape (free) + ones channel.
    x3 = x_nchw.reshape(N, Cin, M)
    x_aug = jnp.concatenate([x3, jnp.ones((N, 1, M), x_nchw.dtype)], axis=1)

    # Static per-(H, W) boundary masks for the 8 off-center depthwise taps.
    ys, xs = jnp.meshgrid(jnp.arange(H), jnp.arange(W), indexing="ij")
    mrows = []
    for dy in (-1, 0, 1):
        for dx in (-1, 0, 1):
            if dy == 0 and dx == 0:
                continue
            m = ((xs + dx >= 0) & (xs + dx <= W - 1) &
                 (ys + dy >= 0) & (ys + dy <= H - 1))
            mrows.append(m.reshape(-1))
    masks = jnp.stack(mrows).astype(jnp.float32)                # (8, M)

    def rep(shape):
        nd = len(shape)
        return pl.BlockSpec(shape, lambda n: (0,) * nd)         # same block every step

    grid_spec = pltpu.PrefetchScalarGridSpec(
        num_scalar_prefetch=0,
        grid=(N,),                                              # one image per step
        in_specs=[
            pl.BlockSpec((None, Cin + 1, M), lambda n: (n, 0, 0)),
            rep(w0a.shape), rep(w1a.shape), rep(dwf.shape),
            rep(w2a.shape), rep(wda.shape), rep(bias.shape), rep(masks.shape),
        ],
        out_specs=pl.BlockSpec((None, Cout, M), lambda n: (n, 0, 0)),
    )
    out3 = pl.pallas_call(
        functools.partial(pep_kernel, W=W),
        out_shape=jax.ShapeDtypeStruct((N, Cout, M), x_nchw.dtype),
        grid_spec=grid_spec,
        # Per-image blocks are tiny vs scoped VMEM on all generations; "parallel"
        # lets v7x spread images over both TensorCores.
        compiler_params=pltpu.CompilerParams(dimension_semantics=("parallel",)),
    )(x_aug, w0a, w1a, dwf, w2a, wda, bias, masks)

    return out3.reshape(N, Cout, H, W)                          # NCHW, no transpose


def pep_reference(x, params):
    """Pure-JAX NCHW f32 reference with the same folded BN parameters."""
    (w0, s0, b0, w1, s1, b1, dw, sdw, bdw, w2, s2, b2, wd, sd, bd) = params

    def leaky(v):
        return jnp.where(v > 0, v, NEG_SLOPE * v)

    def conv1x1_bn(h, w, s, bias):
        y = jnp.einsum('nchw,dc->ndhw', h, w)
        return y * s.reshape(1, -1, 1, 1) + bias.reshape(1, -1, 1, 1)

    h0 = leaky(conv1x1_bn(x, w0, s0, b0))
    h1 = leaky(conv1x1_bn(h0, w1, s1, b1))
    H, W = h1.shape[2], h1.shape[3]
    padded = jnp.pad(h1, ((0, 0), (0, 0), (1, 1), (1, 1)))
    acc = jnp.zeros_like(h1)
    for ky in range(3):
        for kx in range(3):
            acc = acc + padded[:, :, ky:ky + H, kx:kx + W] * dw[:, ky, kx].reshape(1, -1, 1, 1)
    dwq = leaky(acc * sdw.reshape(1, -1, 1, 1) + bdw.reshape(1, -1, 1, 1))
    h2 = conv1x1_bn(dwq, w2, s2, b2)
    ident = conv1x1_bn(x, wd, sd, bd)
    return leaky(ident + h2)


def make_params(key, in_dim, mid_dim, out_dim, ratios=2, eps=1e-5):
    """Deterministic synthetic params in PyTorch-native shapes; BN folded (eval)."""
    mid2 = mid_dim * ratios
    keys = iter(jax.random.split(key, 32))

    def conv_w(cout, cin):
        return jax.random.normal(next(keys), (cout, cin), jnp.float32) * 0.1

    def bn(c):
        gamma = jax.random.uniform(next(keys), (c,), jnp.float32, 0.5, 1.5)
        beta = jax.random.normal(next(keys), (c,), jnp.float32) * 0.1
        mean = jax.random.normal(next(keys), (c,), jnp.float32) * 0.1
        var = jax.random.uniform(next(keys), (c,), jnp.float32, 0.5, 1.5)
        scale = gamma / jnp.sqrt(var + eps)
        shift = beta - mean * scale
        return scale, shift

    w0 = conv_w(mid_dim, in_dim); s0, b0 = bn(mid_dim)
    w1 = conv_w(mid2, mid_dim);   s1, b1 = bn(mid2)
    dw = jax.random.normal(next(keys), (mid2, 3, 3), jnp.float32) * 0.1
    sdw, bdw = bn(mid2)
    w2 = conv_w(out_dim, mid2);   s2, b2 = bn(out_dim)
    wd = conv_w(out_dim, in_dim); sd, bd = bn(out_dim)   # downsample (in_dim != out_dim)
    return (w0, s0, b0, w1, s1, b1, dw, sdw, bdw, w2, s2, b2, wd, sd, bd)


if __name__ == "__main__":
    # Small shapes consistent with the module: N=2, Cin=4, H=W=16, mid=8, out=8.
    N, Cin, H, W = 2, 4, 16, 16
    mid_dim, out_dim, ratios = 8, 8, 2

    key = jax.random.PRNGKey(0)
    kx, kp = jax.random.split(key)
    x_nchw = jax.random.normal(kx, (N, Cin, H, W), jnp.float32)   # PyTorch layout
    params = make_params(kp, Cin, mid_dim, out_dim, ratios)

    out = jax.block_until_ready(jax.jit(pep_forward)(x_nchw, params))
    ref = jax.block_until_ready(pep_reference(x_nchw, params))

    assert out.shape == (N, out_dim, H, W)
    # Matmul operands (and folded bias columns) run in bf16 on the MXU with f32
    # accumulation; the reference is pure f32, so allow bf16-level tolerance.
    np.testing.assert_allclose(np.asarray(out), np.asarray(ref), rtol=2e-2, atol=2e-2)
    print("KERNEL_OK")
</pallas_src>

<mosaic_0001>
module attributes {stable_mosaic.version = 11 : i64} {
  func.func @pep_kernel(%arg0: i32, %arg1: memref<1x5x256xf32, #tpu.memory_space<vmem>>, %arg2: memref<8x5xbf16, #tpu.memory_space<vmem>>, %arg3: memref<16x8xbf16, #tpu.memory_space<vmem>>, %arg4: memref<16x9xf32, #tpu.memory_space<vmem>>, %arg5: memref<8x16xbf16, #tpu.memory_space<vmem>>, %arg6: memref<8x5xbf16, #tpu.memory_space<vmem>>, %arg7: memref<16x2xf32, #tpu.memory_space<vmem>>, %arg8: memref<8x256xf32, #tpu.memory_space<vmem>>, %arg9: memref<1x8x256xf32, #tpu.memory_space<vmem>>) attributes {dimension_semantics = [#tpu.dimension_semantics<parallel>], iteration_bounds = array<i64: 2>, scalar_prefetch = 0 : i64, scratch_operands = 0 : i64, tpu.core_type = #tpu.core_type<tc>, window_params = [{transform_indices = @transform_0, window_bounds = array<i64: 1, 5, 256>}, {pipeline_mode = #tpu.pipeline_mode<synchronous>, transform_indices = @transform_1, window_bounds = array<i64: 8, 5>}, {pipeline_mode = #tpu.pipeline_mode<synchronous>, transform_indices = @transform_2, window_bounds = array<i64: 16, 8>}, {pipeline_mode = #tpu.pipeline_mode<synchronous>, transform_indices = @transform_3, window_bounds = array<i64: 16, 9>}, {pipeline_mode = #tpu.pipeline_mode<synchronous>, transform_indices = @transform_4, window_bounds = array<i64: 8, 16>}, {pipeline_mode = #tpu.pipeline_mode<synchronous>, transform_indices = @transform_5, window_bounds = array<i64: 8, 5>}, {pipeline_mode = #tpu.pipeline_mode<synchronous>, transform_indices = @transform_6, window_bounds = array<i64: 16, 2>}, {pipeline_mode = #tpu.pipeline_mode<synchronous>, transform_indices = @transform_7, window_bounds = array<i64: 8, 256>}, {transform_indices = @transform_8, window_bounds = array<i64: 1, 8, 256>}]} {
    %c0 = arith.constant 0 : index
    %c0_0 = arith.constant 0 : index
    %c0_1 = arith.constant 0 : index
    %0 = vector.load %arg1[%c0, %c0_0, %c0_1] : memref<1x5x256xf32, #tpu.memory_space<vmem>>, vector<1x5x256xf32>
    %1 = vector.shape_cast %0 : vector<1x5x256xf32> to vector<5x256xf32>
    %2 = arith.truncf %1 : vector<5x256xf32> to vector<5x256xbf16>
    %c0_2 = arith.constant 0 : index
    %c0_3 = arith.constant 0 : index
    %3 = vector.load %arg7[%c0_2, %c0_3] : memref<16x2xf32, #tpu.memory_space<vmem>>, vector<16x2xf32>
    %c0_4 = arith.constant 0 : index
    %c0_5 = arith.constant 0 : index
    %4 = vector.load %arg2[%c0_4, %c0_5] : memref<8x5xbf16, #tpu.memory_space<vmem>>, vector<8x5xbf16>
    %cst = arith.constant dense<0.000000e+00> : vector<8x256xf32>
    %5 = tpu.matmul %4, %2, %cst {dimension_numbers = #tpu.dot_dimension_numbers<[1], [0], [0], [1], [0, 0, 1, 1], [], []>} : vector<8x5xbf16>, vector<5x256xbf16>, vector<8x256xf32> -> vector<8x256xf32>
    %cst_6 = arith.constant 0.00999999977 : f32
    %6 = vector.broadcast %cst_6 : f32 to vector<8x256xf32>
    %7 = arith.mulf %6, %5 : vector<8x256xf32>
    %8 = arith.maximumf %5, %7 : vector<8x256xf32>
    %c0_7 = arith.constant 0 : index
    %c0_8 = arith.constant 0 : index
    %9 = vector.load %arg3[%c0_7, %c0_8] : memref<16x8xbf16, #tpu.memory_space<vmem>>, vector<16x8xbf16>
    %10 = arith.truncf %8 : vector<8x256xf32> to vector<8x256xbf16>
    %cst_9 = arith.constant dense<0.000000e+00> : vector<16x256xf32>
    %11 = tpu.matmul %9, %10, %cst_9 {dimension_numbers = #tpu.dot_dimension_numbers<[1], [0], [0], [1], [0, 0, 1, 1], [], []>} : vector<16x8xbf16>, vector<8x256xbf16>, vector<16x256xf32> -> vector<16x256xf32>
    %12 = vector.extract_strided_slice %3 {offsets = [0, 0], sizes = [16, 1], strides = [1, 1]} : vector<16x2xf32> to vector<16x1xf32>
    %13 = vector.broadcast %12 : vector<16x1xf32> to vector<16x256xf32>
    %14 = arith.addf %11, %13 : vector<16x256xf32>
    %cst_10 = arith.constant 0.00999999977 : f32
    %15 = vector.broadcast %cst_10 : f32 to vector<16x256xf32>
    %16 = arith.mulf %15, %14 : vector<16x256xf32>
    %17 = arith.maximumf %14, %16 : vector<16x256xf32>
    %c0_11 = arith.constant 0 : index
    %c0_12 = arith.constant 0 : index
    %18 = vector.load %arg4[%c0_11, %c0_12] : memref<16x9xf32, #tpu.memory_space<vmem>>, vector<16x9xf32>
    %c0_13 = arith.constant 0 : index
    %c0_14 = arith.constant 0 : index
    %19 = vector.load %arg8[%c0_13, %c0_14] : memref<8x256xf32, #tpu.memory_space<vmem>>, vector<8x256xf32>
    %20 = vector.extract_strided_slice %18 {offsets = [0, 4], sizes = [16, 1], strides = [1, 1]} : vector<16x9xf32> to vector<16x1xf32>
    %21 = vector.broadcast %20 : vector<16x1xf32> to vector<16x256xf32>
    %22 = arith.mulf %17, %21 : vector<16x256xf32>
    %c17_i32 = arith.constant 17 : i32
    %23 = tpu.dynamic_rotate %17 by %c17_i32 dim 1 : vector<16x256xf32>, i32 -> vector<16x256xf32>
    %24 = vector.extract_strided_slice %19 {offsets = [0, 0], sizes = [1, 256], strides = [1, 1]} : vector<8x256xf32> to vector<1x256xf32>
    %25 = vector.broadcast %24 : vector<1x256xf32> to vector<16x256xf32>
    %26 = arith.mulf %23, %25 : vector<16x256xf32>
    %27 = vector.extract_strided_slice %18 {offsets = [0, 0], sizes = [16, 1], strides = [1, 1]} : vector<16x9xf32> to vector<16x1xf32>
    %28 = vector.broadcast %27 : vector<16x1xf32> to vector<16x256xf32>
    %29 = arith.mulf %26, %28 : vector<16x256xf32>
    %30 = arith.addf %22, %29 : vector<16x256xf32>
    %c16_i32 = arith.constant 16 : i32
    %31 = tpu.dynamic_rotate %17 by %c16_i32 dim 1 : vector<16x256xf32>, i32 -> vector<16x256xf32>
    %32 = vector.extract_strided_slice %19 {offsets = [1, 0], sizes = [1, 256], strides = [1, 1]} : vector<8x256xf32> to vector<1x256xf32>
    %33 = vector.broadcast %32 : vector<1x256xf32> to vector<16x256xf32>
    %34 = arith.mulf %31, %33 : vector<16x256xf32>
    %35 = vector.extract_strided_slice %18 {offsets = [0, 1], sizes = [16, 1], strides = [1, 1]} : vector<16x9xf32> to vector<16x1xf32>
    %36 = vector.broadcast %35 : vector<16x1xf32> to vector<16x256xf32>
    %37 = arith.mulf %34, %36 : vector<16x256xf32>
    %38 = arith.addf %30, %37 : vector<16x256xf32>
    %c15_i32 = arith.constant 15 : i32
    %39 = tpu.dynamic_rotate %17 by %c15_i32 dim 1 : vector<16x256xf32>, i32 -> vector<16x256xf32>
    %40 = vector.extract_strided_slice %19 {offsets = [2, 0], sizes = [1, 256], strides = [1, 1]} : vector<8x256xf32> to vector<1x256xf32>
    %41 = vector.broadcast %40 : vector<1x256xf32> to vector<16x256xf32>
    %42 = arith.mulf %39, %41 : vector<16x256xf32>
    %43 = vector.extract_strided_slice %18 {offsets = [0, 2], sizes = [16, 1], strides = [1, 1]} : vector<16x9xf32> to vector<16x1xf32>
    %44 = vector.broadcast %43 : vector<16x1xf32> to vector<16x256xf32>
    %45 = arith.mulf %42, %44 : vector<16x256xf32>
    %46 = arith.addf %38, %45 : vector<16x256xf32>
    %c1_i32 = arith.constant 1 : i32
    %47 = tpu.dynamic_rotate %17 by %c1_i32 dim 1 : vector<16x256xf32>, i32 -> vector<16x256xf32>
    %48 = vector.extract_strided_slice %19 {offsets = [3, 0], sizes = [1, 256], strides = [1, 1]} : vector<8x256xf32> to vector<1x256xf32>
    %49 = vector.broadcast %48 : vector<1x256xf32> to vector<16x256xf32>
    %50 = arith.mulf %47, %49 : vector<16x256xf32>
    %51 = vector.extract_strided_slice %18 {offsets = [0, 3], sizes = [16, 1], strides = [1, 1]} : vector<16x9xf32> to vector<16x1xf32>
    %52 = vector.broadcast %51 : vector<16x1xf32> to vector<16x256xf32>
    %53 = arith.mulf %50, %52 : vector<16x256xf32>
    %54 = arith.addf %46, %53 : vector<16x256xf32>
    %c255_i32 = arith.constant 255 : i32
    %55 = tpu.dynamic_rotate %17 by %c255_i32 dim 1 : vector<16x256xf32>, i32 -> vector<16x256xf32>
    %56 = vector.extract_strided_slice %19 {offsets = [4, 0], sizes = [1, 256], strides = [1, 1]} : vector<8x256xf32> to vector<1x256xf32>
    %57 = vector.broadcast %56 : vector<1x256xf32> to vector<16x256xf32>
    %58 = arith.mulf %55, %57 : vector<16x256xf32>
    %59 = vector.extract_strided_slice %18 {offsets = [0, 5], sizes = [16, 1], strides = [1, 1]} : vector<16x9xf32> to vector<16x1xf32>
    %60 = vector.broadcast %59 : vector<16x1xf32> to vector<16x256xf32>
    %61 = arith.mulf %58, %60 : vector<16x256xf32>
    %62 = arith.addf %54, %61 : vector<16x256xf32>
    %c241_i32 = arith.constant 241 : i32
    %63 = tpu.dynamic_rotate %17 by %c241_i32 dim 1 : vector<16x256xf32>, i32 -> vector<16x256xf32>
    %64 = vector.extract_strided_slice %19 {offsets = [5, 0], sizes = [1, 256], strides = [1, 1]} : vector<8x256xf32> to vector<1x256xf32>
    %65 = vector.broadcast %64 : vector<1x256xf32> to vector<16x256xf32>
    %66 = arith.mulf %63, %65 : vector<16x256xf32>
    %67 = vector.extract_strided_slice %18 {offsets = [0, 6], sizes = [16, 1], strides = [1, 1]} : vector<16x9xf32> to vector<16x1xf32>
    %68 = vector.broadcast %67 : vector<16x1xf32> to vector<16x256xf32>
    %69 = arith.mulf %66, %68 : vector<16x256xf32>
    %70 = arith.addf %62, %69 : vector<16x256xf32>
    %c240_i32 = arith.constant 240 : i32
    %71 = tpu.dynamic_rotate %17 by %c240_i32 dim 1 : vector<16x256xf32>, i32 -> vector<16x256xf32>
    %72 = vector.extract_strided_slice %19 {offsets = [6, 0], sizes = [1, 256], strides = [1, 1]} : vector<8x256xf32> to vector<1x256xf32>
    %73 = vector.broadcast %72 : vector<1x256xf32> to vector<16x256xf32>
    %74 = arith.mulf %71, %73 : vector<16x256xf32>
    %75 = vector.extract_strided_slice %18 {offsets = [0, 7], sizes = [16, 1], strides = [1, 1]} : vector<16x9xf32> to vector<16x1xf32>
    %76 = vector.broadcast %75 : vector<16x1xf32> to vector<16x256xf32>
    %77 = arith.mulf %74, %76 : vector<16x256xf32>
    %78 = arith.addf %70, %77 : vector<16x256xf32>
    %c239_i32 = arith.constant 239 : i32
    %79 = tpu.dynamic_rotate %17 by %c239_i32 dim 1 : vector<16x256xf32>, i32 -> vector<16x256xf32>
    %80 = vector.extract_strided_slice %19 {offsets = [7, 0], sizes = [1, 256], strides = [1, 1]} : vector<8x256xf32> to vector<1x256xf32>
    %81 = vector.broadcast %80 : vector<1x256xf32> to vector<16x256xf32>
    %82 = arith.mulf %79, %81 : vector<16x256xf32>
    %83 = vector.extract_strided_slice %18 {offsets = [0, 8], sizes = [16, 1], strides = [1, 1]} : vector<16x9xf32> to vector<16x1xf32>
    %84 = vector.broadcast %83 : vector<16x1xf32> to vector<16x256xf32>
    %85 = arith.mulf %82, %84 : vector<16x256xf32>
    %86 = arith.addf %78, %85 : vector<16x256xf32>
    %87 = vector.extract_strided_slice %3 {offsets = [0, 1], sizes = [16, 1], strides = [1, 1]} : vector<16x2xf32> to vector<16x1xf32>
    %88 = vector.broadcast %87 : vector<16x1xf32> to vector<16x256xf32>
    %89 = arith.addf %86, %88 : vector<16x256xf32>
    %cst_15 = arith.constant 0.00999999977 : f32
    %90 = vector.broadcast %cst_15 : f32 to vector<16x256xf32>
    %91 = arith.mulf %90, %89 : vector<16x256xf32>
    %92 = arith.maximumf %89, %91 : vector<16x256xf32>
    %c0_16 = arith.constant 0 : index
    %c0_17 = arith.constant 0 : index
    %93 = vector.load %arg5[%c0_16, %c0_17] : memref<8x16xbf16, #tpu.memory_space<vmem>>, vector<8x16xbf16>
    %94 = arith.truncf %92 : vector<16x256xf32> to vector<16x256xbf16>
    %cst_18 = arith.constant dense<0.000000e+00> : vector<8x256xf32>
    %95 = tpu.matmul %93, %94, %cst_18 {dimension_numbers = #tpu.dot_dimension_numbers<[1], [0], [0], [1], [0, 0, 1, 1], [], []>} : vector<8x16xbf16>, vector<16x256xbf16>, vector<8x256xf32> -> vector<8x256xf32>
    %c0_19 = arith.constant 0 : index
    %c0_20 = arith.constant 0 : index
    %96 = vector.load %arg6[%c0_19, %c0_20] : memref<8x5xbf16, #tpu.memory_space<vmem>>, vector<8x5xbf16>
    %cst_21 = arith.constant dense<0.000000e+00> : vector<8x256xf32>
    %97 = tpu.matmul %96, %2, %cst_21 {dimension_numbers = #tpu.dot_dimension_numbers<[1], [0], [0], [1], [0, 0, 1, 1], [], []>} : vector<8x5xbf16>, vector<5x256xbf16>, vector<8x256xf32> -> vector<8x256xf32>
    %98 = arith.addf %97, %95 : vector<8x256xf32>
    %cst_22 = arith.constant 0.00999999977 : f32
    %99 = vector.broadcast %cst_22 : f32 to vector<8x256xf32>
    %100 = arith.mulf %99, %98 : vector<8x256xf32>
    %101 = arith.maximumf %98, %100 : vector<8x256xf32>
    %c0_23 = arith.constant 0 : index
    %c0_24 = arith.constant 0 : index
    %c0_25 = arith.constant 0 : index
    %102 = vector.load %arg9[%c0_23, %c0_24, %c0_25] : memref<1x8x256xf32, #tpu.memory_space<vmem>>, vector<1x8x256xf32>
    %103 = vector.shape_cast %102 : vector<1x8x256xf32> to vector<8x256xf32>
    %104 = vector.shape_cast %101 : vector<8x256xf32> to vector<1x8x256xf32>
    tpu.vector_store %arg9[%c0_23, %c0_24, %c0_25], %104 {strides = array<i32>} : memref<1x8x256xf32, #tpu.memory_space<vmem>>, vector<1x8x256xf32>,
    return
  }
  func.func @transform_0(%arg0: i32) -> (i32, i32, i32) {
    %c0_i32 = arith.constant 0 : i32
    %c0_i32_0 = arith.constant 0 : i32
    %c0_i32_1 = arith.constant 0 : i32
    return %arg0, %c0_i32, %c0_i32_0 : i32, i32, i32
  }
  func.func @transform_1(%arg0: i32) -> (i32, i32) {
    %c0_i32 = arith.constant 0 : i32
    %c0_i32_0 = arith.constant 0 : i32
    %c0_i32_1 = arith.constant 0 : i32
    return %c0_i32, %c0_i32_0 : i32, i32
  }
  func.func @transform_2(%arg0: i32) -> (i32, i32) {
    %c0_i32 = arith.constant 0 : i32
    %c0_i32_0 = arith.constant 0 : i32
    %c0_i32_1 = arith.constant 0 : i32
    return %c0_i32, %c0_i32_0 : i32, i32
  }
  func.func @transform_3(%arg0: i32) -> (i32, i32) {
    %c0_i32 = arith.constant 0 : i32
    %c0_i32_0 = arith.constant 0 : i32
    %c0_i32_1 = arith.constant 0 : i32
    return %c0_i32, %c0_i32_0 : i32, i32
  }
  func.func @transform_4(%arg0: i32) -> (i32, i32) {
    %c0_i32 = arith.constant 0 : i32
    %c0_i32_0 = arith.constant 0 : i32
    %c0_i32_1 = arith.constant 0 : i32
    return %c0_i32, %c0_i32_0 : i32, i32
  }
  func.func @transform_5(%arg0: i32) -> (i32, i32) {
    %c0_i32 = arith.constant 0 : i32
    %c0_i32_0 = arith.constant 0 : i32
    %c0_i32_1 = arith.constant 0 : i32
    return %c0_i32, %c0_i32_0 : i32, i32
  }
  func.func @transform_6(%arg0: i32) -> (i32, i32) {
    %c0_i32 = arith.constant 0 : i32
    %c0_i32_0 = arith.constant 0 : i32
    %c0_i32_1 = arith.constant 0 : i32
    return %c0_i32, %c0_i32_0 : i32, i32
  }
  func.func @transform_7(%arg0: i32) -> (i32, i32) {
    %c0_i32 = arith.constant 0 : i32
    %c0_i32_0 = arith.constant 0 : i32
    %c0_i32_1 = arith.constant 0 : i32
    return %c0_i32, %c0_i32_0 : i32, i32
  }
  func.func @transform_8(%arg0: i32) -> (i32, i32, i32) {
    %c0_i32 = arith.constant 0 : i32
    %c0_i32_0 = arith.constant 0 : i32
    %c0_i32_1 = arith.constant 0 : i32
    return %arg0, %c0_i32, %c0_i32_0 : i32, i32, i32
  }
}

</mosaic_0001>

<llo_original>
// kernel: pep_forward.1
$region0: #{pep_forward.1}
  #allocation0 [shape = 'u32[]', space=smem, size = 0x4, offset = 0x4, fixed_abs, tag = 'smem constant byte address 0x4 - core index']
  #allocation1 [shape = 'u32[144,128]{1,0:T(1,128)}', space=vmem, size = 0x12000, scoped, tag = 'internal scratch']
  %s0 = inlined_call_operand.vmem [shape: f32[2,5,256], index: 0, kind: input, shape index: {}]
  %s1 = inlined_call_operand.vmem [shape: bf16[8,5], index: 1, kind: input, shape index: {}]
  %s2 = inlined_call_operand.vmem [shape: bf16[16,8], index: 2, kind: input, shape index: {}]
  %s3 = inlined_call_operand.vmem [shape: f32[16,9], index: 3, kind: input, shape index: {}]
  %s4 = inlined_call_operand.vmem [shape: bf16[8,16], index: 4, kind: input, shape index: {}]
  %s5 = inlined_call_operand.vmem [shape: bf16[8,5], index: 5, kind: input, shape index: {}]
  %s6 = inlined_call_operand.vmem [shape: f32[16,2], index: 6, kind: input, shape index: {}]
  %s7 = inlined_call_operand.vmem [shape: f32[8,256], index: 7, kind: input, shape index: {}]
  %s8 = inlined_call_operand.vmem [shape: f32[2,8,256], index: 8, kind: output, shape index: {}]
  %s9 = sld [smem:[#allocation0]]
  $region65: #{pep_forward.1} parent=0
    _
  %s11 = ssub.s32 1, %s9
  %s12 = scalar_select 0, %s11, %s9
  loop: start=0, step=1, limit=4
  $region2: #{pep_forward.1} parent=0 // loop_pre_header
    _
  $region3: #{pep_forward.1} parent=0 // loop_header
    %s14 = sphi 0, %s18
    %p15 = scmp.ge.s32.totalorder %s14, 4
    %s24 = sphi 0, %s26
    %s27 = sphi 0, %s24
    %s28 = sphi 0, %s27
    %s44 = sphi 0, %s28
    %s48 = sphi 0, %s48
    %s50 = sphi 0, %s48
    %s51 = sphi 0, %s50
    %s65 = sphi 0, %s51
    %s69 = sphi 0, %s69
    %s71 = sphi 0, %s69
    %s72 = sphi 0, %s71
    %s86 = sphi 0, %s72
    %s90 = sphi 0, %s90
    %s92 = sphi 0, %s90
    %s93 = sphi 0, %s92
    %s107 = sphi 0, %s93
    %s111 = sphi 0, %s111
    %s113 = sphi 0, %s111
    %s114 = sphi 0, %s113
    %s128 = sphi 0, %s114
    %s132 = sphi 0, %s132
    %s134 = sphi 0, %s132
    %s135 = sphi 0, %s134
    %s149 = sphi 0, %s135
    %s153 = sphi 0, %s153
    %s155 = sphi 0, %s153
    %s156 = sphi 0, %s155
    %s170 = sphi 0, %s156
    %s174 = sphi 0, %s174
    %s176 = sphi 0, %s174
    %s177 = sphi 0, %s176
    %s191 = sphi 0, %s177
    %s197 = sphi 0, %s199
    %s200 = sphi 0, %s197
    %s201 = sphi 0, %s200
    %s217 = sphi 0, %s201
  $region4: #{pep_forward.1} parent=0 // loop_header_branch
    %17 = sbr.rel (%p15) target = $region8
  $region5: #{pep_forward.1} parent=0 // loop_body
    %s19 = ssub.s32 %s14, 1
    %s20 = ssub.s32 %s14, 2
    %s21 = sadd.s32 %s14, 1
    %s22 = ssub.s32 %s14, %s21
    %p23 = scmp.eq.s32.totalorder %s22, 0
    %s25 = sadd.s32 %s24, 1
    %s26 = scalar_select %p23, %s24, %s25
    %p29 = pneg %p23
    %p30 = scmp.eq.s32.totalorder %s14, 1
    %p31 = por %p29, %p30
    %p32 = scmp.ne.s32.totalorder %s24, %s27
    %p33 = scmp.eq.s32.totalorder %s14, 0
    %p34 = por %p32, %p33
    %p35 = scmp.ne.s32.totalorder %s24, %s27
    %p36 = scmp.eq.s32.totalorder %s19, 1
    %p37 = por %p35, %p36
    %p38 = scmp.ne.s32.totalorder %s27, %s28
    %p39 = scmp.eq.s32.totalorder %s19, 0
    %p40 = por %p38, %p39
    %p41 = scmp.ne.s32.totalorder %s27, %s28
    %p42 = scmp.eq.s32.totalorder %s20, 1
    %p43 = por %p41, %p42
    %p45 = scmp.ne.s32.totalorder %s28, %s44
    %p46 = scmp.eq.s32.totalorder %s20, 0
    %p47 = por %p45, %p46
    %s49 = sadd.s32 %s48, 1
    %p52 = scmp.eq.s32.totalorder %s14, 1
    %p53 = scmp.ne.s32.totalorder %s48, %s50
    %p54 = scmp.eq.s32.totalorder %s14, 0
    %p55 = por %p53, %p54
    %p56 = scmp.ne.s32.totalorder %s48, %s50
    %p57 = scmp.eq.s32.totalorder %s19, 1
    %p58 = por %p56, %p57
    %p59 = scmp.ne.s32.totalorder %s50, %s51
    %p60 = scmp.eq.s32.totalorder %s19, 0
    %p61 = por %p59, %p60
    %p62 = scmp.ne.s32.totalorder %s50, %s51
    %p63 = scmp.eq.s32.totalorder %s20, 1
    %p64 = por %p62, %p63
    %p66 = scmp.ne.s32.totalorder %s51, %s65
    %p67 = scmp.eq.s32.totalorder %s20, 0
    %p68 = por %p66, %p67
    %s70 = sadd.s32 %s69, 1
    %p73 = scmp.eq.s32.totalorder %s14, 1
    %p74 = scmp.ne.s32.totalorder %s69, %s71
    %p75 = scmp.eq.s32.totalorder %s14, 0
    %p76 = por %p74, %p75
    %p77 = scmp.ne.s32.totalorder %s69, %s71
    %p78 = scmp.eq.s32.totalorder %s19, 1
    %p79 = por %p77, %p78
    %p80 = scmp.ne.s32.totalorder %s71, %s72
    %p81 = scmp.eq.s32.totalorder %s19, 0
    %p82 = por %p80, %p81
    %p83 = scmp.ne.s32.totalorder %s71, %s72
    %p84 = scmp.eq.s32.totalorder %s20, 1
    %p85 = por %p83, %p84
    %p87 = scmp.ne.s32.totalorder %s72, %s86
    %p88 = scmp.eq.s32.totalorder %s20, 0
    %p89 = por %p87, %p88
    %s91 = sadd.s32 %s90, 1
    %p94 = scmp.eq.s32.totalorder %s14, 1
    %p95 = scmp.ne.s32.totalorder %s90, %s92
    %p96 = scmp.eq.s32.totalorder %s14, 0
    %p97 = por %p95, %p96
    %p98 = scmp.ne.s32.totalorder %s90, %s92
    %p99 = scmp.eq.s32.totalorder %s19, 1
    %p100 = por %p98, %p99
    %p101 = scmp.ne.s32.totalorder %s92, %s93
    %p102 = scmp.eq.s32.totalorder %s19, 0
    %p103 = por %p101, %p102
    %p104 = scmp.ne.s32.totalorder %s92, %s93
    %p105 = scmp.eq.s32.totalorder %s20, 1
    %p106 = por %p104, %p105
    %p108 = scmp.ne.s32.totalorder %s93, %s107
    %p109 = scmp.eq.s32.totalorder %s20, 0
    %p110 = por %p108, %p109
    %s112 = sadd.s32 %s111, 1
    %p115 = scmp.eq.s32.totalorder %s14, 1
    %p116 = scmp.ne.s32.totalorder %s111, %s113
    %p117 = scmp.eq.s32.totalorder %s14, 0
    %p118 = por %p116, %p117
    %p119 = scmp.ne.s32.totalorder %s111, %s113
    %p120 = scmp.eq.s32.totalorder %s19, 1
    %p121 = por %p119, %p120
    %p122 = scmp.ne.s32.totalorder %s113, %s114
    %p123 = scmp.eq.s32.totalorder %s19, 0
    %p124 = por %p122, %p123
    %p125 = scmp.ne.s32.totalorder %s113, %s114
    %p126 = scmp.eq.s32.totalorder %s20, 1
    %p127 = por %p125, %p126
    %p129 = scmp.ne.s32.totalorder %s114, %s128
    %p130 = scmp.eq.s32.totalorder %s20, 0
    %p131 = por %p129, %p130
    %s133 = sadd.s32 %s132, 1
    %p136 = scmp.eq.s32.totalorder %s14, 1
    %p137 = scmp.ne.s32.totalorder %s132, %s134
    %p138 = scmp.eq.s32.totalorder %s14, 0
    %p139 = por %p137, %p138
    %p140 = scmp.ne.s32.totalorder %s132, %s134
    %p141 = scmp.eq.s32.totalorder %s19, 1
    %p142 = por %p140, %p141
    %p143 = scmp.ne.s32.totalorder %s134, %s135
    %p144 = scmp.eq.s32.totalorder %s19, 0
    %p145 = por %p143, %p144
    %p146 = scmp.ne.s32.totalorder %s134, %s135
    %p147 = scmp.eq.s32.totalorder %s20, 1
    %p148 = por %p146, %p147
    %p150 = scmp.ne.s32.totalorder %s135, %s149
    %p151 = scmp.eq.s32.totalorder %s20, 0
    %p152 = por %p150, %p151
    %s154 = sadd.s32 %s153, 1
    %p157 = scmp.eq.s32.totalorder %s14, 1
    %p158 = scmp.ne.s32.totalorder %s153, %s155
    %p159 = scmp.eq.s32.totalorder %s14, 0
    %p160 = por %p158, %p159
    %p161 = scmp.ne.s32.totalorder %s153, %s155
    %p162 = scmp.eq.s32.totalorder %s19, 1
    %p163 = por %p161, %p162
    %p164 = scmp.ne.s32.totalorder %s155, %s156
    %p165 = scmp.eq.s32.totalorder %s19, 0
    %p166 = por %p164, %p165
    %p167 = scmp.ne.s32.totalorder %s155, %s156
    %p168 = scmp.eq.s32.totalorder %s20, 1
    %p169 = por %p167, %p168
    %p171 = scmp.ne.s32.totalorder %s156, %s170
    %p172 = scmp.eq.s32.totalorder %s20, 0
    %p173 = por %p171, %p172
    %s175 = sadd.s32 %s174, 1
    %p178 = scmp.eq.s32.totalorder %s14, 1
    %p179 = scmp.ne.s32.totalorder %s174, %s176
    %p180 = scmp.eq.s32.totalorder %s14, 0
    %p181 = por %p179, %p180
    %p182 = scmp.ne.s32.totalorder %s174, %s176
    %p183 = scmp.eq.s32.totalorder %s19, 1
    %p184 = por %p182, %p183
    %p185 = scmp.ne.s32.totalorder %s176, %s177
    %p186 = scmp.eq.s32.totalorder %s19, 0
    %p187 = por %p185, %p186
    %p188 = scmp.ne.s32.totalorder %s176, %s177
    %p189 = scmp.eq.s32.totalorder %s20, 1
    %p190 = por %p188, %p189
    %p192 = scmp.ne.s32.totalorder %s177, %s191
    %p193 = scmp.eq.s32.totalorder %s20, 0
    %p194 = por %p192, %p193
    %s195 = ssub.s32 %s14, %s21
    %p196 = scmp.eq.s32.totalorder %s195, 0
    %s198 = sadd.s32 %s197, 1
    %s199 = scalar_select %p196, %s197, %s198
    %p202 = pneg %p196
    %p203 = scmp.eq.s32.totalorder %s14, 1
    %p204 = por %p202, %p203
    %p205 = scmp.ne.s32.totalorder %s197, %s200
    %p206 = scmp.eq.s32.totalorder %s14, 0
    %p207 = por %p205, %p206
    %p208 = scmp.ne.s32.totalorder %s197, %s200
    %p209 = scmp.eq.s32.totalorder %s19, 1
    %p210 = por %p208, %p209
    %p211 = scmp.ne.s32.totalorder %s200, %s201
    %p212 = scmp.eq.s32.totalorder %s19, 0
    %p213 = por %p211, %p212
    %p214 = scmp.ne.s32.totalorder %s200, %s201
    %p215 = scmp.eq.s32.totalorder %s20, 1
    %p216 = por %p214, %p215
    %p218 = scmp.ne.s32.totalorder %s201, %s217
    %p219 = scmp.eq.s32.totalorder %s20, 0
    %p220 = por %p218, %p219
    %p221 = scmp.le.s32.totalorder 1, %s14
    %p222 = scmp.lt.s32.totalorder %s14, 3
    %p223 = pnand %p221, %p222
    %p224 = pneg %p223
    // Predicated region
    $region9: #{pep_forward.1} parent=5 // pred_check
      _
    $region10: #{pep_forward.1} parent=5 // pred_check_branch
      %226 = sbr.rel (%p223) target = $region12
    $region11: #{pep_forward.1} parent=5 // pred_region
      %s227 = ssub.s32 %s14, 1
      // Predicated region
      $region13: #{pep_forward.1} parent=11 // pred_check
        %p228 = pneg %p61
      $region14: #{pep_forward.1} parent=11 // pred_check_branch
        %230 = sbr.rel (%p228) target = $region16
      $region15: #{pep_forward.1} parent=11 // pred_region
        _
      $region16: #{pep_forward.1} parent=11 // pred_fallthru
        _
      // Predicated region
      $region17: #{pep_forward.1} parent=11 // pred_check
        %p231 = pneg %p82
      $region18: #{pep_forward.1} parent=11 // pred_check_branch
        %233 = sbr.rel (%p231) target = $region20
      $region19: #{pep_forward.1} parent=11 // pred_region
        _
      $region20: #{pep_forward.1} parent=11 // pred_fallthru
        _
      // Predicated region
      $region21: #{pep_forward.1} parent=11 // pred_check
        %p234 = pneg %p103
      $region22: #{pep_forward.1} parent=11 // pred_check_branch
        %236 = sbr.rel (%p234) target = $region24
      $region23: #{pep_forward.1} parent=11 // pred_region
        _
      $region24: #{pep_forward.1} parent=11 // pred_fallthru
        _
      // Predicated region
      $region25: #{pep_forward.1} parent=11 // pred_check
        %p237 = pneg %p124
      $region26: #{pep_forward.1} parent=11 // pred_check_branch
        %239 = sbr.rel (%p237) target = $region28
      $region27: #{pep_forward.1} parent=11 // pred_region
        _
      $region28: #{pep_forward.1} parent=11 // pred_fallthru
        _
      // Predicated region
      $region29: #{pep_forward.1} parent=11 // pred_check
        %p240 = pneg %p145
      $region30: #{pep_forward.1} parent=11 // pred_check_branch
        %242 = sbr.rel (%p240) target = $region32
      $region31: #{pep_forward.1} parent=11 // pred_region
        _
      $region32: #{pep_forward.1} parent=11 // pred_fallthru
        _
      // Predicated region
      $region33: #{pep_forward.1} parent=11 // pred_check
        %p243 = pneg %p166
      $region34: #{pep_forward.1} parent=11 // pred_check_branch
        %245 = sbr.rel (%p243) target = $region36
      $region35: #{pep_forward.1} parent=11 // pred_region
        _
      $region36: #{pep_forward.1} parent=11 // pred_fallthru
        _
      // Predicated region
      $region37: #{pep_forward.1} parent=11 // pred_check
        %p246 = pneg %p187
      $region38: #{pep_forward.1} parent=11 // pred_check_branch
        %248 = sbr.rel (%p246) target = $region40
      $region39: #{pep_forward.1} parent=11 // pred_region
        _
      $region40: #{pep_forward.1} parent=11 // pred_fallthru
        _
    $region12: #{pep_forward.1} parent=5 // pred_fallthru
      _
    %p249 = scmp.lt.s32.totalorder %s14, 2
    // Predicated region
    $region41: #{pep_forward.1} parent=5 // pred_check
      %p250 = pneg %p249
    $region42: #{pep_forward.1} parent=5 // pred_check_branch
      %252 = sbr.rel (%p250) target = $region44
    $region43: #{pep_forward.1} parent=5 // pred_region
      // Predicated region
      $region45: #{pep_forward.1} parent=43 // pred_check
        %p253 = pneg %p34
      $region46: #{pep_forward.1} parent=43 // pred_check_branch
        %255 = sbr.rel (%p253) target = $region48
      $region47: #{pep_forward.1} parent=43 // pred_region
        %p256 = scmp.lt.s32.totalorder %s14, 1
        %s257 = scalar_select %p256, %s14, 1
        %s258 = smul.addr %s257, 2
        %s259 = smul.addr %s258, 8
        %s260 = scalar_lea.vmem %s0, %s259
      $region48: #{pep_forward.1} parent=43 // pred_fallthru
        _
    $region44: #{pep_forward.1} parent=5 // pred_fallthru
      _
    %p261 = scmp.le.s32.totalorder 1, %s14
    %p262 = scmp.lt.s32.totalorder %s14, 3
    %p263 = pnand %p261, %p262
    %p264 = pneg %p263
    // Predicated region
    $region49: #{pep_forward.1} parent=5 // pred_check
      _
    $region50: #{pep_forward.1} parent=5 // pred_check_branch
      %266 = sbr.rel (%p263) target = $region52
    $region51: #{pep_forward.1} parent=5 // pred_region
      %s267 = ssub.s32 %s14, 1
      %p268 = scmp.lt.s32.totalorder %s19, 1
      %s269 = scalar_select %p268, %s19, 1
      %s270 = smul.addr %s269, 2
      %s271 = smul.addr %s270, 8
      %s272 = scalar_lea.vmem %s0, %s271
      %p273 = pneg %p40
      %p274 = pneg %p37
      %p275 = pneg %p61
      %p276 = pneg %p58
      %p277 = pneg %p82
      %p278 = pneg %p79
      %p279 = pneg %p103
      %p280 = pneg %p100
      %p281 = pneg %p124
      %p282 = pneg %p121
      %p283 = pneg %p145
      %p284 = pneg %p142
      %p285 = pneg %p166
      %p286 = pneg %p163
      %p287 = pneg %p187
      %p288 = pneg %p184
      %p289 = pneg %p213
      %p290 = pneg %p210
      %p291 = scmp.lt.s32.totalorder %s19, 1
      %s292 = scalar_select %p291, %s19, 1
      %s293 = smul.addr %s292, 2
      %s294 = smul.addr %s293, 8
      %s295 = scalar_lea.vmem %s8, %s294
      %p296 = scmp.lt.s32.totalorder %s19, 1
      %s297 = scalar_select %p296, %s19, 1
      %s298 = smul.addr %s297, 2
      %s299 = smul.addr %s298, 8
      %s300 = scalar_lea.vmem %s0, %s299
      %p301 = scmp.lt.s32.totalorder %s19, 1
      %s302 = scalar_select %p301, %s19, 1
      %s303 = smul.addr %s302, 2
      %s304 = smul.addr %s303, 8
      %s305 = scalar_lea.vmem %s8, %s304
      %v307 = vld [vmem:[%s300] sm:$0x1f]
      %v308 = vld [vmem:[%s300 + $0x8] sm:$0x1f]
      %v309 = vpack.c.bf16 %v307, %v307
      %v310 = vpack.c.bf16 %v308, %v308
      %v311 = vld [vmem:[%s6] sm:$0xff]
      %v312 = vld [vmem:[%s6 + $0x8] sm:$0xff]
      %v313 = vld [vmem:[%s1] sm:$0xf]
      %vm314 = vcmask 39936
      %v316 = vsel %vm314, %v313, 0
      %vm318 = vcmask 1041408
      %vm319 = vcmask 1042432
      %v320 = vsel %vm318, 4294967295, 65535
      %v321 = vsel %vm319, %v320, 0
      %v323 = vand.u32 %v309, %v321
      %v326 = vand.u32 %v310, %v321
      %328 = vmatprep.subr.bf16.mxu0 %v326
      %329 = vmatpush1.bf16.msra.mxu0 %v323
      %330 = vmatprep.subr.bf16.mxu0 0
      %331 = vmatpush1.bf16.msra.mxu0 0
      %332 = vmatprep.subr.bf16.mxu0 0
      %333 = vmatpush1.bf16.msra.mxu0 0
      %334 = vmatprep.subr.bf16.mxu0 0
      %335 = vmatpush1.bf16.msra.mxu0 0
      %336 = vmatprep.subr.bf16.mxu0 0
      %337 = vmatpush1.bf16.msra.mxu0 0
      %338 = vmatprep.subr.bf16.mxu0 0
      %339 = vmatpush1.bf16.msra.mxu0 0
      %340 = vmatprep.subr.bf16.mxu0 0
      %341 = vmatpush1.bf16.msra.mxu0 0
      %342 = vmatprep.subr.bf16.mxu0 0
      %343 = vmatpush1.bf16.msra.mxu0 0
      %344 = vmatprep.subr.bf16.mxu0 0
      %345 = vmatpush1.bf16.msra.mxu0 0
      %346 = vmatprep.subr.bf16.mxu0 0
      %347 = vmatpush1.bf16.msra.mxu0 0
      %348 = vmatprep.subr.bf16.mxu0 0
      %349 = vmatpush1.bf16.msra.mxu0 0
      %350 = vmatprep.subr.bf16.mxu0 0
      %351 = vmatpush1.bf16.msra.mxu0 0
      %352 = vmatprep.subr.bf16.mxu0 0
      %353 = vmatpush1.bf16.msra.mxu0 0
      %354 = vmatprep.subr.bf16.mxu0 0
      %355 = vmatpush1.bf16.msra.mxu0 0
      %356 = vmatprep.subr.bf16.mxu0 0
      %357 = vmatpush1.bf16.msra.mxu0 0
      %358 = vmatprep.subr.bf16.mxu0 0
      %359 = vmatpush1.bf16.msra.mxu0 0
      %360 = vmatprep.mubr.bf16.mxu0 0
      %361 = vmatmul.mubr.bf16.gmra.mrb[0].mxu0 %v316
      %v362 = vpop.f32.mrb[0].mxu0
      %v363 = vadd.f32 0.0, %v362
      %v364 = vpop.f32.mrb[0].mxu0
      %v365 = vadd.f32 0.0, %v364
      %v366 = vpop.f32.mrb[0].mxu0
      %v367 = vpop.f32.mrb[0].mxu0
      %368 = vdwg.mxu0
      %v369 = vmul.f32 %v363, 0.01
      %v370 = vmul.f32 %v365, 0.01
      %v371 = vmax.f32 %v363, %v369
      %v372 = vmax.f32 %v365, %v370
      %v373 = vld [vmem:[%s2] sm:$0xf]
      %v374 = vld [vmem:[%s2 + $0x4] sm:$0xf]
      %v375 = vpack.c.bf16 %v371, %v371
      %v376 = vpack.c.bf16 %v372, %v372
      %378 = vset.pattern.permute.xlu0 0
      %379 = vperm.xlu0 %378, %v311
      %v380 = vpop.permute.xlu0 %379
      %383 = vset.pattern.permute.xlu0 0
      %384 = vperm.xlu0 %383, %v312
      %v385 = vpop.permute.xlu0 %384
      %v389 = vunpack.c.l.b16 %v373
      %v390 = vunpack.c.l.b16 %v374
      %v391 = vpack.c.b16 %v390, %v389
      %vm392 = vcmask 64512
      %v394 = vsel %vm392, %v391, 0
      %vm396 = vcmask 1043456
      %v398 = vsel %vm396, %v375, 0
      %v401 = vsel %vm396, %v376, 0
      %403 = vmatprep.subr.bf16.mxu0 %v401
      %404 = vmatpush1.bf16.msra.mxu0 %v398
      %405 = vmatprep.subr.bf16.mxu0 0
      %406 = vmatpush1.bf16.msra.mxu0 0
      %407 = vmatprep.subr.bf16.mxu0 0
      %408 = vmatpush1.bf16.msra.mxu0 0
      %409 = vmatprep.subr.bf16.mxu0 0
      %410 = vmatpush1.bf16.msra.mxu0 0
      %411 = vmatprep.subr.bf16.mxu0 0
      %412 = vmatpush1.bf16.msra.mxu0 0
      %413 = vmatprep.subr.bf16.mxu0 0
      %414 = vmatpush1.bf16.msra.mxu0 0
      %415 = vmatprep.subr.bf16.mxu0 0
      %416 = vmatpush1.bf16.msra.mxu0 0
      %417 = vmatprep.subr.bf16.mxu0 0
      %418 = vmatpush1.bf16.msra.mxu0 0
      %419 = vmatprep.subr.bf16.mxu0 0
      %420 = vmatpush1.bf16.msra.mxu0 0
      %421 = vmatprep.subr.bf16.mxu0 0
      %422 = vmatpush1.bf16.msra.mxu0 0
      %423 = vmatprep.subr.bf16.mxu0 0
      %424 = vmatpush1.bf16.msra.mxu0 0
      %425 = vmatprep.subr.bf16.mxu0 0
      %426 = vmatpush1.bf16.msra.mxu0 0
      %427 = vmatprep.subr.bf16.mxu0 0
      %428 = vmatpush1.bf16.msra.mxu0 0
      %429 = vmatprep.subr.bf16.mxu0 0
      %430 = vmatpush1.bf16.msra.mxu0 0
      %431 = vmatprep.subr.bf16.mxu0 0
      %432 = vmatpush1.bf16.msra.mxu0 0
      %433 = vmatprep.subr.bf16.mxu0 0
      %434 = vmatpush1.bf16.msra.mxu0 0
      %435 = vmatprep.mubr.bf16.mxu0 0
      %436 = vmatmul.mubr.bf16.gmra.mrb[0].mxu0 %v394
      %v437 = vpop.f32.mrb[0].mxu0
      %v438 = vadd.f32 %v380, %v437
      %v439 = vpop.f32.mrb[0].mxu0
      %v440 = vadd.f32 %v380, %v439
      %v441 = vpop.f32.mrb[0].mxu0
      %v442 = vadd.f32 %v385, %v441
      %v443 = vpop.f32.mrb[0].mxu0
      %v444 = vadd.f32 %v385, %v443
      %445 = vdwg.mxu0
      %v446 = vmul.f32 %v438, 0.01
      %v447 = vmul.f32 %v440, 0.01
      %v448 = vmul.f32 %v442, 0.01
      %v449 = vmul.f32 %v444, 0.01
      %v450 = vmax.f32 %v438, %v446
      %v451 = vmax.f32 %v440, %v447
      %v452 = vmax.f32 %v442, %v448
      %v453 = vmax.f32 %v444, %v449
      %v454 = vld [vmem:[%s3] sm:$0xff]
      %v455 = vld [vmem:[%s3 + $0x8] sm:$0xff]
      %v456 = vld [vmem:[%s7] sm:$0xff]
      %v457 = vld [vmem:[%s7 + $0x8] sm:$0xff]
      %459 = vset.pattern.permute.xlu0 4
      %460 = vperm.xlu0 %459, %v454
      %v461 = vpop.permute.xlu0 %460
      %464 = vset.pattern.permute.xlu0 4
      %465 = vperm.xlu0 %464, %v455
      %v466 = vpop.permute.xlu0 %465
      %v468 = vmul.f32 %v450, %v461
      %v469 = vmul.f32 %v451, %v461
      %v470 = vmul.f32 %v452, %v466
      %v471 = vmul.f32 %v453, %v466
      %472 = vrot.lane.b32.xlu0 %v450, 17
      %v473 = vpop.permute.xlu0 %472
      %474 = vrot.lane.b32.xlu0 %v452, 17
      %v475 = vpop.permute.xlu0 %474
      %476 = vrot.lane.b32.xlu0 %v451, 17
      %v477 = vpop.permute.xlu0 %476
      %478 = vrot.lane.b32.xlu0 %v453, 17
      %v479 = vpop.permute.xlu0 %478
      %v480 = vlaneseq
      %v481 = vand.u32 %v480, 127
      %vm482 = vcmp.lt.s32.totalorder %v481, 17
      %v483 = vsel %vm482, %v473, %v477
      %v484 = vsel %vm482, %v475, %v479
      %v485 = vsel %vm482, %v477, %v473
      %v486 = vsel %vm482, %v479, %v475
      %v487 = vlaneseq
      %v488 = vshrl.u32 %v487, 7
      %v489 = vsub.s32 0, %v488
      %v490 = vrot.slane %v456, %v489
      %v491 = vlaneseq
      %v492 = vshrl.u32 %v491, 7
      %v493 = vsub.s32 0, %v492
      %v494 = vrot.slane %v457, %v493
      %v495 = vmul.f32 %v485, %v490
      %v496 = vmul.f32 %v483, %v494
      %v497 = vmul.f32 %v486, %v490
      %v498 = vmul.f32 %v484, %v494
      %499 = vset.pattern.permute.xlu0 0
      %500 = vperm.xlu0 %499, %v454
      %v501 = vpop.permute.xlu0 %500
      %503 = vset.pattern.permute.xlu0 0
      %504 = vperm.xlu0 %503, %v455
      %v505 = vpop.permute.xlu0 %504
      %v507 = vmul.f32 %v495, %v501
      %v508 = vmul.f32 %v496, %v501
      %v509 = vmul.f32 %v497, %v505
      %v510 = vmul.f32 %v498, %v505
      %v511 = vadd.f32 %v468, %v507
      %v512 = vadd.f32 %v469, %v508
      %v513 = vadd.f32 %v470, %v509
      %v514 = vadd.f32 %v471, %v510
      %515 = vrot.lane.b32.xlu0 %v450, 16
      %v516 = vpop.permute.xlu0 %515
      %517 = vrot.lane.b32.xlu0 %v452, 16
      %v518 = vpop.permute.xlu0 %517
      %519 = vrot.lane.b32.xlu0 %v451, 16
      %v520 = vpop.permute.xlu0 %519
      %521 = vrot.lane.b32.xlu0 %v453, 16
      %v522 = vpop.permute.xlu0 %521
      %vm523 = vcmp.lt.s32.totalorder %v481, 16
      %v524 = vsel %vm523, %v516, %v520
      %v525 = vsel %vm523, %v518, %v522
      %v526 = vsel %vm523, %v520, %v516
      %v527 = vsel %vm523, %v522, %v518
      %v528 = vlaneseq
      %v529 = vshrl.u32 %v528, 7
      %v530 = vsub.s32 1, %v529
      %v531 = vrot.slane %v456, %v530
      %v532 = vlaneseq
      %v533 = vshrl.u32 %v532, 7
      %v534 = vsub.s32 1, %v533
      %v535 = vrot.slane %v457, %v534
      %v536 = vmul.f32 %v526, %v531
      %v537 = vmul.f32 %v524, %v535
      %v538 = vmul.f32 %v527, %v531
      %v539 = vmul.f32 %v525, %v535
      %540 = vset.pattern.permute.xlu0 1
      %541 = vperm.xlu0 %540, %v454
      %v542 = vpop.permute.xlu0 %541
      %544 = vset.pattern.permute.xlu0 1
      %545 = vperm.xlu0 %544, %v455
      %v546 = vpop.permute.xlu0 %545
      %v548 = vmul.f32 %v536, %v542
      %v549 = vmul.f32 %v537, %v542
      %v550 = vmul.f32 %v538, %v546
      %v551 = vmul.f32 %v539, %v546
      %v552 = vadd.f32 %v511, %v548
      %v553 = vadd.f32 %v512, %v549
      %v554 = vadd.f32 %v513, %v550
      %v555 = vadd.f32 %v514, %v551
      %556 = vrot.lane.b32.xlu0 %v450, 15
      %v557 = vpop.permute.xlu0 %556
      %558 = vrot.lane.b32.xlu0 %v452, 15
      %v559 = vpop.permute.xlu0 %558
      %560 = vrot.lane.b32.xlu0 %v451, 15
      %v561 = vpop.permute.xlu0 %560
      %562 = vrot.lane.b32.xlu0 %v453, 15
      %v563 = vpop.permute.xlu0 %562
      %vm564 = vcmp.lt.s32.totalorder %v481, 15
      %v565 = vsel %vm564, %v557, %v561
      %v566 = vsel %vm564, %v559, %v563
      %v567 = vsel %vm564, %v561, %v557
      %v568 = vsel %vm564, %v563, %v559
      %v569 = vlaneseq
      %v570 = vshrl.u32 %v569, 7
      %v571 = vsub.s32 2, %v570
      %v572 = vrot.slane %v456, %v571
      %v573 = vlaneseq
      %v574 = vshrl.u32 %v573, 7
      %v575 = vsub.s32 2, %v574
      %v576 = vrot.slane %v457, %v575
      %v577 = vmul.f32 %v567, %v572
      %v578 = vmul.f32 %v565, %v576
      %v579 = vmul.f32 %v568, %v572
      %v580 = vmul.f32 %v566, %v576
      %581 = vset.pattern.permute.xlu0 2
      %582 = vperm.xlu0 %581, %v454
      %v583 = vpop.permute.xlu0 %582
      %585 = vset.pattern.permute.xlu0 2
      %586 = vperm.xlu0 %585, %v455
      %v587 = vpop.permute.xlu0 %586
      %v589 = vmul.f32 %v577, %v583
      %v590 = vmul.f32 %v578, %v583
      %v591 = vmul.f32 %v579, %v587
      %v592 = vmul.f32 %v580, %v587
      %v593 = vadd.f32 %v552, %v589
      %v594 = vadd.f32 %v553, %v590
      %v595 = vadd.f32 %v554, %v591
      %v596 = vadd.f32 %v555, %v592
      %597 = vrot.lane.b32.xlu0 %v450, 1
      %v598 = vpop.permute.xlu0 %597
      %599 = vrot.lane.b32.xlu0 %v452, 1
      %v600 = vpop.permute.xlu0 %599
      %601 = vrot.lane.b32.xlu0 %v451, 1
      %v602 = vpop.permute.xlu0 %601
      %603 = vrot.lane.b32.xlu0 %v453, 1
      %v604 = vpop.permute.xlu0 %603
      %vm605 = vcmp.lt.s32.totalorder %v481, 1
      %v606 = vsel %vm605, %v598, %v602
      %v607 = vsel %vm605, %v600, %v604
      %v608 = vsel %vm605, %v602, %v598
      %v609 = vsel %vm605, %v604, %v600
      %v610 = vlaneseq
      %v611 = vshrl.u32 %v610, 7
      %v612 = vsub.s32 3, %v611
      %v613 = vrot.slane %v456, %v612
      %v614 = vlaneseq
      %v615 = vshrl.u32 %v614, 7
      %v616 = vsub.s32 3, %v615
      %v617 = vrot.slane %v457, %v616
      %v618 = vmul.f32 %v608, %v613
      %v619 = vmul.f32 %v606, %v617
      %v620 = vmul.f32 %v609, %v613
      %v621 = vmul.f32 %v607, %v617
      %622 = vset.pattern.permute.xlu0 3
      %623 = vperm.xlu0 %622, %v454
      %v624 = vpop.permute.xlu0 %623
      %626 = vset.pattern.permute.xlu0 3
      %627 = vperm.xlu0 %626, %v455
      %v628 = vpop.permute.xlu0 %627
      %v630 = vmul.f32 %v618, %v624
      %v631 = vmul.f32 %v619, %v624
      %v632 = vmul.f32 %v620, %v628
      %v633 = vmul.f32 %v621, %v628
      %v634 = vadd.f32 %v593, %v630
      %v635 = vadd.f32 %v594, %v631
      %v636 = vadd.f32 %v595, %v632
      %v637 = vadd.f32 %v596, %v633
      %638 = vrot.lane.b32.xlu0 %v450, 127
      %v639 = vpop.permute.xlu0 %638
      %640 = vrot.lane.b32.xlu0 %v452, 127
      %v641 = vpop.permute.xlu0 %640
      %642 = vrot.lane.b32.xlu0 %v451, 127
      %v643 = vpop.permute.xlu0 %642
      %644 = vrot.lane.b32.xlu0 %v453, 127
      %v645 = vpop.permute.xlu0 %644
      %vm646 = vcmp.lt.s32.totalorder %v481, 127
      %v647 = vsel %vm646, %v639, %v643
      %v648 = vsel %vm646, %v641, %v645
      %v649 = vsel %vm646, %v643, %v639
      %v650 = vsel %vm646, %v645, %v641
      %v651 = vlaneseq
      %v652 = vshrl.u32 %v651, 7
      %v653 = vsub.s32 4, %v652
      %v654 = vrot.slane %v456, %v653
      %v655 = vlaneseq
      %v656 = vshrl.u32 %v655, 7
      %v657 = vsub.s32 4, %v656
      %v658 = vrot.slane %v457, %v657
      %v659 = vmul.f32 %v647, %v654
      %v660 = vmul.f32 %v649, %v658
      %v661 = vmul.f32 %v648, %v654
      %v662 = vmul.f32 %v650, %v658
      %663 = vset.pattern.permute.xlu0 5
      %664 = vperm.xlu0 %663, %v454
      %v665 = vpop.permute.xlu0 %664
      %667 = vset.pattern.permute.xlu0 5
      %668 = vperm.xlu0 %667, %v455
      %v669 = vpop.permute.xlu0 %668
      %v671 = vmul.f32 %v659, %v665
      %v672 = vmul.f32 %v660, %v665
      %v673 = vmul.f32 %v661, %v669
      %v674 = vmul.f32 %v662, %v669
      %v675 = vadd.f32 %v634, %v671
      %v676 = vadd.f32 %v635, %v672
      %v677 = vadd.f32 %v636, %v673
      %v678 = vadd.f32 %v637, %v674
      %679 = vrot.lane.b32.xlu0 %v450, 113
      %v680 = vpop.permute.xlu0 %679
      %681 = vrot.lane.b32.xlu0 %v452, 113
      %v682 = vpop.permute.xlu0 %681
      %683 = vrot.lane.b32.xlu0 %v451, 113
      %v684 = vpop.permute.xlu0 %683
      %685 = vrot.lane.b32.xlu0 %v453, 113
      %v686 = vpop.permute.xlu0 %685
      %vm687 = vcmp.lt.s32.totalorder %v481, 113
      %v688 = vsel %vm687, %v680, %v684
      %v689 = vsel %vm687, %v682, %v686
      %v690 = vsel %vm687, %v684, %v680
      %v691 = vsel %vm687, %v686, %v682
      %v692 = vlaneseq
      %v693 = vshrl.u32 %v692, 7
      %v694 = vsub.s32 5, %v693
      %v695 = vrot.slane %v456, %v694
      %v696 = vlaneseq
      %v697 = vshrl.u32 %v696, 7
      %v698 = vsub.s32 5, %v697
      %v699 = vrot.slane %v457, %v698
      %v700 = vmul.f32 %v688, %v695
      %v701 = vmul.f32 %v690, %v699
      %v702 = vmul.f32 %v689, %v695
      %v703 = vmul.f32 %v691, %v699
      %704 = vset.pattern.permute.xlu0 6
      %705 = vperm.xlu0 %704, %v454
      %v706 = vpop.permute.xlu0 %705
      %708 = vset.pattern.permute.xlu0 6
      %709 = vperm.xlu0 %708, %v455
      %v710 = vpop.permute.xlu0 %709
      %v712 = vmul.f32 %v700, %v706
      %v713 = vmul.f32 %v701, %v706
      %v714 = vmul.f32 %v702, %v710
      %v715 = vmul.f32 %v703, %v710
      %v716 = vadd.f32 %v675, %v712
      %v717 = vadd.f32 %v676, %v713
      %v718 = vadd.f32 %v677, %v714
      %v719 = vadd.f32 %v678, %v715
      %720 = vrot.lane.b32.xlu0 %v450, 112
      %v721 = vpop.permute.xlu0 %720
      %722 = vrot.lane.b32.xlu0 %v452, 112
      %v723 = vpop.permute.xlu0 %722
      %724 = vrot.lane.b32.xlu0 %v451, 112
      %v725 = vpop.permute.xlu0 %724
      %726 = vrot.lane.b32.xlu0 %v453, 112
      %v727 = vpop.permute.xlu0 %726
      %vm728 = vcmp.lt.s32.totalorder %v481, 112
      %v729 = vsel %vm728, %v721, %v725
      %v730 = vsel %vm728, %v723, %v727
      %v731 = vsel %vm728, %v725, %v721
      %v732 = vsel %vm728, %v727, %v723
      %v733 = vlaneseq
      %v734 = vshrl.u32 %v733, 7
      %v735 = vsub.s32 6, %v734
      %v736 = vrot.slane %v456, %v735
      %v737 = vlaneseq
      %v738 = vshrl.u32 %v737, 7
      %v739 = vsub.s32 6, %v738
      %v740 = vrot.slane %v457, %v739
      %v741 = vmul.f32 %v729, %v736
      %v742 = vmul.f32 %v731, %v740
      %v743 = vmul.f32 %v730, %v736
      %v744 = vmul.f32 %v732, %v740
      %745 = vset.pattern.permute.xlu0 7
      %746 = vperm.xlu0 %745, %v454
      %v747 = vpop.permute.xlu0 %746
      %749 = vset.pattern.permute.xlu0 7
      %750 = vperm.xlu0 %749, %v455
      %v751 = vpop.permute.xlu0 %750
      %v753 = vmul.f32 %v741, %v747
      %v754 = vmul.f32 %v742, %v747
      %v755 = vmul.f32 %v743, %v751
      %v756 = vmul.f32 %v744, %v751
      %v757 = vadd.f32 %v716, %v753
      %v758 = vadd.f32 %v717, %v754
      %v759 = vadd.f32 %v718, %v755
      %v760 = vadd.f32 %v719, %v756
      %761 = vrot.lane.b32.xlu0 %v450, 111
      %v762 = vpop.permute.xlu0 %761
      %763 = vrot.lane.b32.xlu0 %v452, 111
      %v764 = vpop.permute.xlu0 %763
      %765 = vrot.lane.b32.xlu0 %v451, 111
      %v766 = vpop.permute.xlu0 %765
      %767 = vrot.lane.b32.xlu0 %v453, 111
      %v768 = vpop.permute.xlu0 %767
      %vm769 = vcmp.lt.s32.totalorder %v481, 111
      %v770 = vsel %vm769, %v762, %v766
      %v771 = vsel %vm769, %v764, %v768
      %v772 = vsel %vm769, %v766, %v762
      %v773 = vsel %vm769, %v768, %v764
      %v774 = vlaneseq
      %v775 = vshrl.u32 %v774, 7
      %v776 = vsub.s32 7, %v775
      %v777 = vrot.slane %v456, %v776
      %v778 = vlaneseq
      %v779 = vshrl.u32 %v778, 7
      %v780 = vsub.s32 7, %v779
      %v781 = vrot.slane %v457, %v780
      %v782 = vmul.f32 %v770, %v777
      %v783 = vmul.f32 %v772, %v781
      %v784 = vmul.f32 %v771, %v777
      %v785 = vmul.f32 %v773, %v781
      %786 = vset.pattern.permute.xlu0 8
      %787 = vperm.xlu0 %786, %v454
      %v788 = vpop.permute.xlu0 %787
      %790 = vset.pattern.permute.xlu0 8
      %791 = vperm.xlu0 %790, %v455
      %v792 = vpop.permute.xlu0 %791
      %v794 = vmul.f32 %v782, %v788
      %v795 = vmul.f32 %v783, %v788
      %v796 = vmul.f32 %v784, %v792
      %v797 = vmul.f32 %v785, %v792
      %v798 = vadd.f32 %v757, %v794
      %v799 = vadd.f32 %v758, %v795
      %v800 = vadd.f32 %v759, %v796
      %v801 = vadd.f32 %v760, %v797
      %802 = vset.pattern.permute.xlu0 1
      %803 = vperm.xlu0 %802, %v311
      %v804 = vpop.permute.xlu0 %803
      %806 = vset.pattern.permute.xlu0 1
      %807 = vperm.xlu0 %806, %v312
      %v808 = vpop.permute.xlu0 %807
      %v810 = vadd.f32 %v798, %v804
      %v811 = vadd.f32 %v799, %v804
      %v812 = vadd.f32 %v800, %v808
      %v813 = vadd.f32 %v801, %v808
      %v814 = vmul.f32 %v810, 0.01
      %v815 = vmul.f32 %v811, 0.01
      %v816 = vmul.f32 %v812, 0.01
      %v817 = vmul.f32 %v813, 0.01
      %v818 = vmax.f32 %v810, %v814
      %v819 = vmax.f32 %v811, %v815
      %v820 = vmax.f32 %v812, %v816
      %v821 = vmax.f32 %v813, %v817
      %v822 = vld [vmem:[%s4] sm:$0xf]
      %v823 = vpack.c.bf16 %v820, %v818
      %v824 = vpack.c.bf16 %v821, %v819
      %vm825 = vcmask 130048
      %v827 = vsel %vm825, %v822, 0
      %829 = vmatprep.subr.bf16.mxu0 %v824
      %830 = vmatpush1.bf16.msra.mxu0 %v823
      %831 = vmatprep.subr.bf16.mxu0 0
      %832 = vmatpush1.bf16.msra.mxu0 0
      %833 = vmatprep.subr.bf16.mxu0 0
      %834 = vmatpush1.bf16.msra.mxu0 0
      %835 = vmatprep.subr.bf16.mxu0 0
      %836 = vmatpush1.bf16.msra.mxu0 0
      %837 = vmatprep.subr.bf16.mxu0 0
      %838 = vmatpush1.bf16.msra.mxu0 0
      %839 = vmatprep.subr.bf16.mxu0 0
      %840 = vmatpush1.bf16.msra.mxu0 0
      %841 = vmatprep.subr.bf16.mxu0 0
      %842 = vmatpush1.bf16.msra.mxu0 0
      %843 = vmatprep.subr.bf16.mxu0 0
      %844 = vmatpush1.bf16.msra.mxu0 0
      %845 = vmatprep.subr.bf16.mxu0 0
      %846 = vmatpush1.bf16.msra.mxu0 0
      %847 = vmatprep.subr.bf16.mxu0 0
      %848 = vmatpush1.bf16.msra.mxu0 0
      %849 = vmatprep.subr.bf16.mxu0 0
      %850 = vmatpush1.bf16.msra.mxu0 0
      %851 = vmatprep.subr.bf16.mxu0 0
      %852 = vmatpush1.bf16.msra.mxu0 0
      %853 = vmatprep.subr.bf16.mxu0 0
      %854 = vmatpush1.bf16.msra.mxu0 0
      %855 = vmatprep.subr.bf16.mxu0 0
      %856 = vmatpush1.bf16.msra.mxu0 0
      %857 = vmatprep.subr.bf16.mxu0 0
      %858 = vmatpush1.bf16.msra.mxu0 0
      %859 = vmatprep.subr.bf16.mxu0 0
      %860 = vmatpush1.bf16.msra.mxu0 0
      %861 = vmatprep.mubr.bf16.mxu0 0
      %862 = vmatmul.mubr.bf16.gmra.mrb[0].mxu0 %v827
      %v863 = vpop.f32.mrb[0].mxu0
      %v864 = vadd.f32 0.0, %v863
      %v865 = vpop.f32.mrb[0].mxu0
      %v866 = vadd.f32 0.0, %v865
      %v867 = vpop.f32.mrb[0].mxu0
      %v868 = vpop.f32.mrb[0].mxu0
      %869 = vdwg.mxu0
      %v870 = vld [vmem:[%s5] sm:$0xf]
      %v872 = vsel %vm314, %v870, 0
      %874 = vmatprep.subr.bf16.mxu0 %v326
      %875 = vmatpush1.bf16.msra.mxu0 %v323
      %876 = vmatprep.subr.bf16.mxu0 0
      %877 = vmatpush1.bf16.msra.mxu0 0
      %878 = vmatprep.subr.bf16.mxu0 0
      %879 = vmatpush1.bf16.msra.mxu0 0
      %880 = vmatprep.subr.bf16.mxu0 0
      %881 = vmatpush1.bf16.msra.mxu0 0
      %882 = vmatprep.subr.bf16.mxu0 0
      %883 = vmatpush1.bf16.msra.mxu0 0
      %884 = vmatprep.subr.bf16.mxu0 0
      %885 = vmatpush1.bf16.msra.mxu0 0
      %886 = vmatprep.subr.bf16.mxu0 0
      %887 = vmatpush1.bf16.msra.mxu0 0
      %888 = vmatprep.subr.bf16.mxu0 0
      %889 = vmatpush1.bf16.msra.mxu0 0
      %890 = vmatprep.subr.bf16.mxu0 0
      %891 = vmatpush1.bf16.msra.mxu0 0
      %892 = vmatprep.subr.bf16.mxu0 0
      %893 = vmatpush1.bf16.msra.mxu0 0
      %894 = vmatprep.subr.bf16.mxu0 0
      %895 = vmatpush1.bf16.msra.mxu0 0
      %896 = vmatprep.subr.bf16.mxu0 0
      %897 = vmatpush1.bf16.msra.mxu0 0
      %898 = vmatprep.subr.bf16.mxu0 0
      %899 = vmatpush1.bf16.msra.mxu0 0
      %900 = vmatprep.subr.bf16.mxu0 0
      %901 = vmatpush1.bf16.msra.mxu0 0
      %902 = vmatprep.subr.bf16.mxu0 0
      %903 = vmatpush1.bf16.msra.mxu0 0
      %904 = vmatprep.subr.bf16.mxu0 0
      %905 = vmatpush1.bf16.msra.mxu0 0
      %906 = vmatprep.mubr.bf16.mxu0 0
      %907 = vmatmul.mubr.bf16.gmra.mrb[0].mxu0 %v872
      %v908 = vpop.f32.mrb[0].mxu0
      %v909 = vadd.f32 %v864, %v908
      %v910 = vpop.f32.mrb[0].mxu0
      %v911 = vadd.f32 %v866, %v910
      %v912 = vpop.f32.mrb[0].mxu0
      %v913 = vpop.f32.mrb[0].mxu0
      %914 = vdwg.mxu0
      %v915 = vmul.f32 %v909, 0.01
      %v916 = vmul.f32 %v911, 0.01
      %v917 = vmax.f32 %v909, %v915
      %v918 = vmax.f32 %v911, %v916
      %919 = vst [vmem:[%s305] sm:$0xff] %v917
      %920 = vst [vmem:[%s305 + $0x8] sm:$0xff] %v918
      %p921 = scmp.lt.s32.totalorder %s19, 1
      %s922 = scalar_select %p921, %s19, 1
      %s923 = smul.addr %s922, 2
      %s924 = smul.addr %s923, 8
      %s925 = scalar_lea.vmem %s8, %s924
      // Predicated region
      $region53: #{pep_forward.1} parent=51 // pred_check
        %p926 = pneg %p210
      $region54: #{pep_forward.1} parent=51 // pred_check_branch
        %928 = sbr.rel (%p926) target = $region56
      $region55: #{pep_forward.1} parent=51 // pred_region
        _
      $region56: #{pep_forward.1} parent=51 // pred_fallthru
        _
    $region52: #{pep_forward.1} parent=5 // pred_fallthru
      _
    %p929 = scmp.le.s32.totalorder 2, %s14
    // Predicated region
    $region57: #{pep_forward.1} parent=5 // pred_check
      %p930 = pneg %p929
    $region58: #{pep_forward.1} parent=5 // pred_check_branch
      %932 = sbr.rel (%p930) target = $region60
    $region59: #{pep_forward.1} parent=5 // pred_region
      %s933 = ssub.s32 %s14, 2
      // Predicated region
      $region61: #{pep_forward.1} parent=59 // pred_check
        %p934 = pneg %p216
      $region62: #{pep_forward.1} parent=59 // pred_check_branch
        %936 = sbr.rel (%p934) target = $region64
      $region63: #{pep_forward.1} parent=59 // pred_region
        %p937 = scmp.lt.s32.totalorder %s20, 1
        %s938 = scalar_select %p937, %s20, 1
        %s939 = smul.addr %s938, 2
        %s940 = smul.addr %s939, 8
        %s941 = scalar_lea.vmem %s8, %s940
      $region64: #{pep_forward.1} parent=59 // pred_fallthru
        _
    $region60: #{pep_forward.1} parent=5 // pred_fallthru
      _
  $region6: #{pep_forward.1} parent=0 // loop_footer
    %s18 = sadd.s32 1, %s14
  $region7: #{pep_forward.1} parent=0 // loop_footer_branch
    %13 = sbr.rel target = $region3
  $region8: #{pep_forward.1} parent=0 // loop_exit
    _

</llo_original>
